<compile_context>
chip_gen: v7x
topology: tpu7x:2x2x1
jax: 0.10.0
libtpu: 0.0.40
codegen_flags: <defaults>
</compile_context>

<pallas_src>
import jax
import jax.numpy as jnp
from jax.experimental import pallas as pl
from jax.experimental.pallas import tpu as pltpu


def _embed_kernel(x_ref, oh_ref, w1t_ref, w2t_ref, b_ref, out_ref):
    """One (batch, S-tile) step of fused pointwise-conv + bias + channel concat.

    x_ref:   (C_in, TS)  dynamic-feature channels for this spatial tile
    oh_ref:  (nc,  TS)   one-hot channels for this spatial tile
    w1t_ref: (E, C_in)   dyn_emb weight (transposed), resident
    w2t_ref: (E, nc)     onehots_emb weight (transposed), resident
    b_ref:   (2E, 1)     packed [b1; b2] bias column, resident
    out_ref: (2E, TS)    channel-first output tile (rows [0,E)=dyn, [E,2E)=onehots)
    """
    E = w1t_ref.shape[0]
    y1 = jnp.dot(w1t_ref[...], x_ref[...], preferred_element_type=jnp.float32)
    y2 = jnp.dot(w2t_ref[...], oh_ref[...], preferred_element_type=jnp.float32)
    # Bias add on the VPU; the "concat" is just writing the two sublane halves.
    out_ref[:E, :] = (y1 + b_ref[:E, :]).astype(out_ref.dtype)
    out_ref[E:, :] = (y2 + b_ref[E:, :]).astype(out_ref.dtype)


def embed_layer_pallas(x, onehots, w1, b1, w2, b2, *, ts_max=2048, out_dtype=None):
    """x: (N, C_in, T, V, M), onehots: (N, nc, T, V, M)  (NCDHW).

    w1: (C_in, E), b1: (E,), w2: (nc, E), b2: (E,).
    Returns (N, 2*E, T, V, M), matching
    torch.cat((dyn_emb(x), onehots_emb(onehots)), dim=1) at module defaults.

    ts_max: cap on the spatial (lane) tile; multiple of 128 so production-sized
            S gets unmasked lane-dense stores and double-buffered blocks stay
            small enough for v7x's 64 MiB VMEM.
    out_dtype: output dtype (default x.dtype). Pass jnp.bfloat16 to halve the
            dominant output-store HBM traffic if downstream consumers allow it.
    """
    N, C_in, T, V, M = x.shape
    nc = onehots.shape[1]
    E = w1.shape[1]
    S = T * V * M
    if out_dtype is None:
        out_dtype = x.dtype

    assert ts_max % 128 == 0
    if S <= ts_max:
        TS = S                      # full-S block (allowed: equals full dim)
        num_s = 1
    else:
        TS = ts_max                 # 128-multiple; last partial tile is masked
        num_s = pl.cdiv(S, TS)

    # Free row-major views: (N, C, T, V, M) -> (N, C, S).  No HBM copies.
    x_flat = x.reshape(N, C_in, S)
    oh_flat = onehots.reshape(N, nc, S).astype(x.dtype)

    # Tiny resident parameters.
    w1t = w1.T.astype(jnp.float32)                          # (E, C_in)
    w2t = w2.T.astype(jnp.float32)                          # (E, nc)
    bp = jnp.concatenate([b1, b2]).astype(jnp.float32).reshape(2 * E, 1)

    out = pl.pallas_call(
        _embed_kernel,
        out_shape=jax.ShapeDtypeStruct((N, 2 * E, S), out_dtype),
        grid_spec=pltpu.PrefetchScalarGridSpec(
            num_scalar_prefetch=0,
            grid=(N, num_s),
            in_specs=[
                # Activations: one batch / one S tile per step.
                pl.BlockSpec((None, C_in, TS), lambda n, s: (n, 0, s)),
                pl.BlockSpec((None, nc, TS), lambda n, s: (n, 0, s)),
                # Parameters: constant index_map -> fetched once, stay resident.
                pl.BlockSpec((E, C_in), lambda n, s: (0, 0)),
                pl.BlockSpec((E, nc), lambda n, s: (0, 0)),
                pl.BlockSpec((2 * E, 1), lambda n, s: (0, 0)),
            ],
            out_specs=pl.BlockSpec((None, 2 * E, TS), lambda n, s: (n, 0, s)),
        ),
        compiler_params=pltpu.CompilerParams(
            dimension_semantics=("parallel", "parallel")),
    )(x_flat, oh_flat, w1t, w2t, bp)

    # Free view back to NCDHW: (N, 2E, S) -> (N, 2E, T, V, M)
    return out.reshape(N, 2 * E, T, V, M)


def embed_layer_ref(x, onehots, w1, b1, w2, b2):
    """Pure-JAX reference (1x1x1 conv == channel matmul + bias, then concat)."""
    y1 = jnp.einsum("ncdhw,ce->nedhw", x, w1) + b1[None, :, None, None, None]
    y2 = jnp.einsum("ncdhw,ce->nedhw", onehots, w2) + b2[None, :, None, None, None]
    return jnp.concatenate([y1, y2], axis=1)


if __name__ == "__main__":
    # Small shapes consistent with the module defaults:
    #   batch N=2, in_channels=4, nc=3, emb_dim=32, spatial (T, V, M)=(8, 4, 3)
    N, C_in, NC, E = 2, 4, 3, 32
    T, V, M = 8, 4, 3

    key = jax.random.PRNGKey(0)
    kx, koh, kw1, kb1, kw2, kb2 = jax.random.split(key, 6)

    x = jax.random.normal(kx, (N, C_in, T, V, M), dtype=jnp.float32)
    onehots = jax.random.normal(koh, (N, NC, T, V, M), dtype=jnp.float32)

    # Conv3d weight (E, C, 1, 1, 1) stored here as (C, E).
    w1 = jax.random.normal(kw1, (C_in, E), dtype=jnp.float32) * 0.1
    b1 = jax.random.normal(kb1, (E,), dtype=jnp.float32) * 0.1
    w2 = jax.random.normal(kw2, (NC, E), dtype=jnp.float32) * 0.1
    b2 = jax.random.normal(kb2, (E,), dtype=jnp.float32) * 0.1

    embed_fn = jax.jit(embed_layer_pallas)
    out = jax.block_until_ready(embed_fn(x, onehots, w1, b1, w2, b2))
    ref = jax.block_until_ready(embed_layer_ref(x, onehots, w1, b1, w2, b2))

    assert out.shape == (N, 2 * E, T, V, M), out.shape
    assert jnp.allclose(out, ref, atol=1e-5, rtol=1e-5), "mismatch vs reference"
    print("KERNEL_OK")
</pallas_src>

<mosaic_0001>
module attributes {stable_mosaic.version = 11 : i64} {
  func.func @_embed_kernel(%arg0: i32, %arg1: i32, %arg2: memref<1x4x96xf32, #tpu.memory_space<vmem>>, %arg3: memref<1x3x96xf32, #tpu.memory_space<vmem>>, %arg4: memref<32x4xf32, #tpu.memory_space<vmem>>, %arg5: memref<32x3xf32, #tpu.memory_space<vmem>>, %arg6: memref<64x1xf32, #tpu.memory_space<vmem>>, %arg7: memref<1x64x96xf32, #tpu.memory_space<vmem>>) attributes {dimension_semantics = [#tpu.dimension_semantics<parallel>, #tpu.dimension_semantics<parallel>], iteration_bounds = array<i64: 2, 1>, scalar_prefetch = 0 : i64, scratch_operands = 0 : i64, tpu.core_type = #tpu.core_type<tc>, window_params = [{transform_indices = @transform_0, window_bounds = array<i64: 1, 4, 96>}, {transform_indices = @transform_1, window_bounds = array<i64: 1, 3, 96>}, {pipeline_mode = #tpu.pipeline_mode<synchronous>, transform_indices = @transform_2, window_bounds = array<i64: 32, 4>}, {pipeline_mode = #tpu.pipeline_mode<synchronous>, transform_indices = @transform_3, window_bounds = array<i64: 32, 3>}, {pipeline_mode = #tpu.pipeline_mode<synchronous>, transform_indices = @transform_4, window_bounds = array<i64: 64, 1>}, {transform_indices = @transform_5, window_bounds = array<i64: 1, 64, 96>}]} {
    %c0 = arith.constant 0 : index
    %c0_0 = arith.constant 0 : index
    %0 = vector.load %arg4[%c0, %c0_0] : memref<32x4xf32, #tpu.memory_space<vmem>>, vector<32x4xf32>
    %c0_1 = arith.constant 0 : index
    %c0_2 = arith.constant 0 : index
    %c0_3 = arith.constant 0 : index
    %1 = vector.load %arg2[%c0_1, %c0_2, %c0_3] : memref<1x4x96xf32, #tpu.memory_space<vmem>>, vector<1x4x96xf32>
    %2 = vector.shape_cast %1 : vector<1x4x96xf32> to vector<4x96xf32>
    %cst = arith.constant dense<0.000000e+00> : vector<32x96xf32>
    %3 = tpu.matmul %0, %2, %cst {dimension_numbers = #tpu.dot_dimension_numbers<[1], [0], [0], [1], [0, 0, 1, 1], [], []>} : vector<32x4xf32>, vector<4x96xf32>, vector<32x96xf32> -> vector<32x96xf32>
    %c0_4 = arith.constant 0 : index
    %c0_5 = arith.constant 0 : index
    %4 = vector.load %arg5[%c0_4, %c0_5] : memref<32x3xf32, #tpu.memory_space<vmem>>, vector<32x3xf32>
    %c0_6 = arith.constant 0 : index
    %c0_7 = arith.constant 0 : index
    %c0_8 = arith.constant 0 : index
    %5 = vector.load %arg3[%c0_6, %c0_7, %c0_8] : memref<1x3x96xf32, #tpu.memory_space<vmem>>, vector<1x3x96xf32>
    %6 = vector.shape_cast %5 : vector<1x3x96xf32> to vector<3x96xf32>
    %cst_9 = arith.constant dense<0.000000e+00> : vector<32x96xf32>
    %7 = tpu.matmul %4, %6, %cst_9 {dimension_numbers = #tpu.dot_dimension_numbers<[1], [0], [0], [1], [0, 0, 1, 1], [], []>} : vector<32x3xf32>, vector<3x96xf32>, vector<32x96xf32> -> vector<32x96xf32>
    %c0_10 = arith.constant 0 : index
    %c0_11 = arith.constant 0 : index
    %8 = vector.load %arg6[%c0_10, %c0_11] : memref<64x1xf32, #tpu.memory_space<vmem>>, vector<32x1xf32>
    %9 = vector.broadcast %8 : vector<32x1xf32> to vector<32x96xf32>
    %10 = arith.addf %3, %9 : vector<32x96xf32>
    %c0_12 = arith.constant 0 : index
    %c0_13 = arith.constant 0 : index
    %c0_14 = arith.constant 0 : index
    %11 = vector.load %arg7[%c0_12, %c0_13, %c0_14] : memref<1x64x96xf32, #tpu.memory_space<vmem>>, vector<1x32x96xf32>
    %12 = vector.shape_cast %11 : vector<1x32x96xf32> to vector<32x96xf32>
    %13 = vector.shape_cast %10 : vector<32x96xf32> to vector<1x32x96xf32>
    tpu.vector_store %arg7[%c0_12, %c0_13, %c0_14], %13 {strides = array<i32>} : memref<1x64x96xf32, #tpu.memory_space<vmem>>, vector<1x32x96xf32>,
    %c32 = arith.constant 32 : index
    %c0_15 = arith.constant 0 : index
    %14 = vector.load %arg6[%c32, %c0_15] : memref<64x1xf32, #tpu.memory_space<vmem>>, vector<32x1xf32>
    %15 = vector.broadcast %14 : vector<32x1xf32> to vector<32x96xf32>
    %16 = arith.addf %7, %15 : vector<32x96xf32>
    %c0_16 = arith.constant 0 : index
    %c32_17 = arith.constant 32 : index
    %c0_18 = arith.constant 0 : index
    %17 = vector.load %arg7[%c0_16, %c32_17, %c0_18] : memref<1x64x96xf32, #tpu.memory_space<vmem>>, vector<1x32x96xf32>
    %18 = vector.shape_cast %17 : vector<1x32x96xf32> to vector<32x96xf32>
    %19 = vector.shape_cast %16 : vector<32x96xf32> to vector<1x32x96xf32>
    tpu.vector_store %arg7[%c0_16, %c32_17, %c0_18], %19 {strides = array<i32>} : memref<1x64x96xf32, #tpu.memory_space<vmem>>, vector<1x32x96xf32>,
    return
  }
  func.func @transform_0(%arg0: i32, %arg1: i32) -> (i32, i32, i32) {
    %c0_i32 = arith.constant 0 : i32
    %c0_i32_0 = arith.constant 0 : i32
    return %arg0, %c0_i32, %arg1 : i32, i32, i32
  }
  func.func @transform_1(%arg0: i32, %arg1: i32) -> (i32, i32, i32) {
    %c0_i32 = arith.constant 0 : i32
    %c0_i32_0 = arith.constant 0 : i32
    return %arg0, %c0_i32, %arg1 : i32, i32, i32
  }
  func.func @transform_2(%arg0: i32, %arg1: i32) -> (i32, i32) {
    %c0_i32 = arith.constant 0 : i32
    %c0_i32_0 = arith.constant 0 : i32
    %c0_i32_1 = arith.constant 0 : i32
    return %c0_i32, %c0_i32_0 : i32, i32
  }
  func.func @transform_3(%arg0: i32, %arg1: i32) -> (i32, i32) {
    %c0_i32 = arith.constant 0 : i32
    %c0_i32_0 = arith.constant 0 : i32
    %c0_i32_1 = arith.constant 0 : i32
    return %c0_i32, %c0_i32_0 : i32, i32
  }
  func.func @transform_4(%arg0: i32, %arg1: i32) -> (i32, i32) {
    %c0_i32 = arith.constant 0 : i32
    %c0_i32_0 = arith.constant 0 : i32
    %c0_i32_1 = arith.constant 0 : i32
    return %c0_i32, %c0_i32_0 : i32, i32
  }
  func.func @transform_5(%arg0: i32, %arg1: i32) -> (i32, i32, i32) {
    %c0_i32 = arith.constant 0 : i32
    %c0_i32_0 = arith.constant 0 : i32
    return %arg0, %c0_i32, %arg1 : i32, i32, i32
  }
}

</mosaic_0001>

<llo_original>
// kernel: embed_layer_pallas.1
$region0: #{embed_layer_pallas.1}
  #allocation0 [shape = 'u32[]', space=smem, size = 0x4, offset = 0x4, fixed_abs, tag = 'smem constant byte address 0x4 - core index']
  #allocation1 [shape = 'u32[144,128]{1,0:T(1,128)}', space=vmem, size = 0x12000, scoped, tag = 'internal scratch']
  %s0 = inlined_call_operand.vmem [shape: f32[2,4,96], index: 0, kind: input, shape index: {}]
  %s1 = inlined_call_operand.vmem [shape: f32[2,3,96], index: 1, kind: input, shape index: {}]
  %s2 = inlined_call_operand.vmem [shape: f32[32,4], index: 2, kind: input, shape index: {}]
  %s3 = inlined_call_operand.vmem [shape: f32[32,3], index: 3, kind: input, shape index: {}]
  %s4 = inlined_call_operand.vmem [shape: f32[64,1], index: 4, kind: input, shape index: {}]
  %s5 = inlined_call_operand.vmem [shape: f32[2,64,96], index: 5, kind: output, shape index: {}]
  %s6 = sld [smem:[#allocation0]]
  $region53: #{embed_layer_pallas.1} parent=0
    _
  %s8 = ssub.s32 1, %s6
  %s9 = scalar_select 0, %s8, %s6
  loop: start=0, step=1, limit=4
  $region2: #{embed_layer_pallas.1} parent=0 // loop_pre_header
    _
  $region3: #{embed_layer_pallas.1} parent=0 // loop_header
    %s11 = sphi 0, %s15
    %p12 = scmp.ge.s32.totalorder %s11, 4
    %s18 = sphi 0, %s30
    %s19 = sphi 0, %s26
    %s20 = sphi 0, %s18
    %s21 = sphi 0, %s19
    %s22 = sphi 0, %s20
    %s23 = sphi 0, %s21
    %s35 = sphi 0, %s37
    %s38 = sphi 0, %s35
    %s39 = sphi 0, %s38
    %s55 = sphi 0, %s39
    %s63 = sphi 0, %s65
    %s66 = sphi 0, %s63
    %s67 = sphi 0, %s66
    %s83 = sphi 0, %s67
    %s87 = sphi 0, %s87
    %s89 = sphi 0, %s87
    %s90 = sphi 0, %s89
    %s104 = sphi 0, %s90
    %s108 = sphi 0, %s108
    %s110 = sphi 0, %s108
    %s111 = sphi 0, %s110
    %s125 = sphi 0, %s111
    %s129 = sphi 0, %s129
    %s131 = sphi 0, %s129
    %s132 = sphi 0, %s131
    %s146 = sphi 0, %s132
    %s154 = sphi 0, %s156
    %s157 = sphi 0, %s154
    %s158 = sphi 0, %s157
    %s174 = sphi 0, %s158
  $region4: #{embed_layer_pallas.1} parent=0 // loop_header_branch
    %14 = sbr.rel (%p12) target = $region8
  $region5: #{embed_layer_pallas.1} parent=0 // loop_body
    %s16 = ssub.s32 %s11, 1
    %s17 = ssub.s32 %s11, 2
    %s24 = sadd.s32 1, %s19
    %p25 = scmp.ge.s32.totalorder %s24, 1
    %s26 = scalar_select %p25, 0, %s24
    %s27 = sadd.s32 1, %s18
    %s28 = scalar_select %p25, %s27, %s18
    %p29 = scmp.ge.s32.totalorder %s28, 2
    %s30 = scalar_select %p29, 0, %s28
    %s31 = ssub.s32 %s18, %s30
    %s32 = ssub.s32 %s19, %s26
    %s33 = sor.u32 %s31, %s32
    %p34 = scmp.eq.s32.totalorder %s33, 0
    %s36 = sadd.s32 %s35, 1
    %s37 = scalar_select %p34, %s35, %s36
    %p40 = pneg %p34
    %p41 = scmp.eq.s32.totalorder %s11, 1
    %p42 = por %p40, %p41
    %p43 = scmp.ne.s32.totalorder %s35, %s38
    %p44 = scmp.eq.s32.totalorder %s11, 0
    %p45 = por %p43, %p44
    %p46 = scmp.ne.s32.totalorder %s35, %s38
    %p47 = scmp.eq.s32.totalorder %s16, 1
    %p48 = por %p46, %p47
    %p49 = scmp.ne.s32.totalorder %s38, %s39
    %p50 = scmp.eq.s32.totalorder %s16, 0
    %p51 = por %p49, %p50
    %p52 = scmp.ne.s32.totalorder %s38, %s39
    %p53 = scmp.eq.s32.totalorder %s17, 1
    %p54 = por %p52, %p53
    %p56 = scmp.ne.s32.totalorder %s39, %s55
    %p57 = scmp.eq.s32.totalorder %s17, 0
    %p58 = por %p56, %p57
    %s59 = ssub.s32 %s18, %s30
    %s60 = ssub.s32 %s19, %s26
    %s61 = sor.u32 %s59, %s60
    %p62 = scmp.eq.s32.totalorder %s61, 0
    %s64 = sadd.s32 %s63, 1
    %s65 = scalar_select %p62, %s63, %s64
    %p68 = pneg %p62
    %p69 = scmp.eq.s32.totalorder %s11, 1
    %p70 = por %p68, %p69
    %p71 = scmp.ne.s32.totalorder %s63, %s66
    %p72 = scmp.eq.s32.totalorder %s11, 0
    %p73 = por %p71, %p72
    %p74 = scmp.ne.s32.totalorder %s63, %s66
    %p75 = scmp.eq.s32.totalorder %s16, 1
    %p76 = por %p74, %p75
    %p77 = scmp.ne.s32.totalorder %s66, %s67
    %p78 = scmp.eq.s32.totalorder %s16, 0
    %p79 = por %p77, %p78
    %p80 = scmp.ne.s32.totalorder %s66, %s67
    %p81 = scmp.eq.s32.totalorder %s17, 1
    %p82 = por %p80, %p81
    %p84 = scmp.ne.s32.totalorder %s67, %s83
    %p85 = scmp.eq.s32.totalorder %s17, 0
    %p86 = por %p84, %p85
    %s88 = sadd.s32 %s87, 1
    %p91 = scmp.eq.s32.totalorder %s11, 1
    %p92 = scmp.ne.s32.totalorder %s87, %s89
    %p93 = scmp.eq.s32.totalorder %s11, 0
    %p94 = por %p92, %p93
    %p95 = scmp.ne.s32.totalorder %s87, %s89
    %p96 = scmp.eq.s32.totalorder %s16, 1
    %p97 = por %p95, %p96
    %p98 = scmp.ne.s32.totalorder %s89, %s90
    %p99 = scmp.eq.s32.totalorder %s16, 0
    %p100 = por %p98, %p99
    %p101 = scmp.ne.s32.totalorder %s89, %s90
    %p102 = scmp.eq.s32.totalorder %s17, 1
    %p103 = por %p101, %p102
    %p105 = scmp.ne.s32.totalorder %s90, %s104
    %p106 = scmp.eq.s32.totalorder %s17, 0
    %p107 = por %p105, %p106
    %s109 = sadd.s32 %s108, 1
    %p112 = scmp.eq.s32.totalorder %s11, 1
    %p113 = scmp.ne.s32.totalorder %s108, %s110
    %p114 = scmp.eq.s32.totalorder %s11, 0
    %p115 = por %p113, %p114
    %p116 = scmp.ne.s32.totalorder %s108, %s110
    %p117 = scmp.eq.s32.totalorder %s16, 1
    %p118 = por %p116, %p117
    %p119 = scmp.ne.s32.totalorder %s110, %s111
    %p120 = scmp.eq.s32.totalorder %s16, 0
    %p121 = por %p119, %p120
    %p122 = scmp.ne.s32.totalorder %s110, %s111
    %p123 = scmp.eq.s32.totalorder %s17, 1
    %p124 = por %p122, %p123
    %p126 = scmp.ne.s32.totalorder %s111, %s125
    %p127 = scmp.eq.s32.totalorder %s17, 0
    %p128 = por %p126, %p127
    %s130 = sadd.s32 %s129, 1
    %p133 = scmp.eq.s32.totalorder %s11, 1
    %p134 = scmp.ne.s32.totalorder %s129, %s131
    %p135 = scmp.eq.s32.totalorder %s11, 0
    %p136 = por %p134, %p135
    %p137 = scmp.ne.s32.totalorder %s129, %s131
    %p138 = scmp.eq.s32.totalorder %s16, 1
    %p139 = por %p137, %p138
    %p140 = scmp.ne.s32.totalorder %s131, %s132
    %p141 = scmp.eq.s32.totalorder %s16, 0
    %p142 = por %p140, %p141
    %p143 = scmp.ne.s32.totalorder %s131, %s132
    %p144 = scmp.eq.s32.totalorder %s17, 1
    %p145 = por %p143, %p144
    %p147 = scmp.ne.s32.totalorder %s132, %s146
    %p148 = scmp.eq.s32.totalorder %s17, 0
    %p149 = por %p147, %p148
    %s150 = ssub.s32 %s18, %s30
    %s151 = ssub.s32 %s19, %s26
    %s152 = sor.u32 %s150, %s151
    %p153 = scmp.eq.s32.totalorder %s152, 0
    %s155 = sadd.s32 %s154, 1
    %s156 = scalar_select %p153, %s154, %s155
    %p159 = pneg %p153
    %p160 = scmp.eq.s32.totalorder %s11, 1
    %p161 = por %p159, %p160
    %p162 = scmp.ne.s32.totalorder %s154, %s157
    %p163 = scmp.eq.s32.totalorder %s11, 0
    %p164 = por %p162, %p163
    %p165 = scmp.ne.s32.totalorder %s154, %s157
    %p166 = scmp.eq.s32.totalorder %s16, 1
    %p167 = por %p165, %p166
    %p168 = scmp.ne.s32.totalorder %s157, %s158
    %p169 = scmp.eq.s32.totalorder %s16, 0
    %p170 = por %p168, %p169
    %p171 = scmp.ne.s32.totalorder %s157, %s158
    %p172 = scmp.eq.s32.totalorder %s17, 1
    %p173 = por %p171, %p172
    %p175 = scmp.ne.s32.totalorder %s158, %s174
    %p176 = scmp.eq.s32.totalorder %s17, 0
    %p177 = por %p175, %p176
    %p178 = scmp.le.s32.totalorder 1, %s11
    %p179 = scmp.lt.s32.totalorder %s11, 3
    %p180 = pnand %p178, %p179
    %p181 = pneg %p180
    // Predicated region
    $region9: #{embed_layer_pallas.1} parent=5 // pred_check
      _
    $region10: #{embed_layer_pallas.1} parent=5 // pred_check_branch
      %183 = sbr.rel (%p180) target = $region12
    $region11: #{embed_layer_pallas.1} parent=5 // pred_region
      %s184 = ssub.s32 %s11, 1
      // Predicated region
      $region13: #{embed_layer_pallas.1} parent=11 // pred_check
        %p185 = pneg %p100
      $region14: #{embed_layer_pallas.1} parent=11 // pred_check_branch
        %187 = sbr.rel (%p185) target = $region16
      $region15: #{embed_layer_pallas.1} parent=11 // pred_region
        _
      $region16: #{embed_layer_pallas.1} parent=11 // pred_fallthru
        _
      // Predicated region
      $region17: #{embed_layer_pallas.1} parent=11 // pred_check
        %p188 = pneg %p121
      $region18: #{embed_layer_pallas.1} parent=11 // pred_check_branch
        %190 = sbr.rel (%p188) target = $region20
      $region19: #{embed_layer_pallas.1} parent=11 // pred_region
        _
      $region20: #{embed_layer_pallas.1} parent=11 // pred_fallthru
        _
      // Predicated region
      $region21: #{embed_layer_pallas.1} parent=11 // pred_check
        %p191 = pneg %p142
      $region22: #{embed_layer_pallas.1} parent=11 // pred_check_branch
        %193 = sbr.rel (%p191) target = $region24
      $region23: #{embed_layer_pallas.1} parent=11 // pred_region
        _
      $region24: #{embed_layer_pallas.1} parent=11 // pred_fallthru
        _
    $region12: #{embed_layer_pallas.1} parent=5 // pred_fallthru
      _
    %p194 = scmp.lt.s32.totalorder %s11, 2
    // Predicated region
    $region25: #{embed_layer_pallas.1} parent=5 // pred_check
      %p195 = pneg %p194
    $region26: #{embed_layer_pallas.1} parent=5 // pred_check_branch
      %197 = sbr.rel (%p195) target = $region28
    $region27: #{embed_layer_pallas.1} parent=5 // pred_region
      // Predicated region
      $region29: #{embed_layer_pallas.1} parent=27 // pred_check
        %p198 = pneg %p45
      $region30: #{embed_layer_pallas.1} parent=27 // pred_check_branch
        %200 = sbr.rel (%p198) target = $region32
      $region31: #{embed_layer_pallas.1} parent=27 // pred_region
        %p201 = scmp.lt.s32.totalorder %s18, 1
        %s202 = scalar_select %p201, %s18, 1
        %p203 = scmp.lt.s32.totalorder %s19, 0
        %s204 = scalar_select %p203, %s19, 0
        %s205 = sadd.s32 %s204, %s202
        %s206 = smul.addr %s205, 4
        %s207 = scalar_lea.vmem %s0, %s206
      $region32: #{embed_layer_pallas.1} parent=27 // pred_fallthru
        _
      // Predicated region
      $region33: #{embed_layer_pallas.1} parent=27 // pred_check
        %p208 = pneg %p73
      $region34: #{embed_layer_pallas.1} parent=27 // pred_check_branch
        %210 = sbr.rel (%p208) target = $region36
      $region35: #{embed_layer_pallas.1} parent=27 // pred_region
        %p211 = scmp.lt.s32.totalorder %s18, 1
        %s212 = scalar_select %p211, %s18, 1
        %p213 = scmp.lt.s32.totalorder %s19, 0
        %s214 = scalar_select %p213, %s19, 0
        %s215 = sadd.s32 %s214, %s212
        %s216 = smul.addr %s215, 4
        %s217 = scalar_lea.vmem %s1, %s216
      $region36: #{embed_layer_pallas.1} parent=27 // pred_fallthru
        _
    $region28: #{embed_layer_pallas.1} parent=5 // pred_fallthru
      _
    %p218 = scmp.le.s32.totalorder 1, %s11
    %p219 = scmp.lt.s32.totalorder %s11, 3
    %p220 = pnand %p218, %p219
    %p221 = pneg %p220
    // Predicated region
    $region37: #{embed_layer_pallas.1} parent=5 // pred_check
      _
    $region38: #{embed_layer_pallas.1} parent=5 // pred_check_branch
      %223 = sbr.rel (%p220) target = $region40
    $region39: #{embed_layer_pallas.1} parent=5 // pred_region
      %s224 = ssub.s32 %s11, 1
      %p225 = scmp.lt.s32.totalorder %s20, 1
      %s226 = scalar_select %p225, %s20, 1
      %p227 = scmp.lt.s32.totalorder %s21, 0
      %s228 = scalar_select %p227, %s21, 0
      %s229 = sadd.s32 %s228, %s226
      %s230 = smul.addr %s229, 4
      %s231 = scalar_lea.vmem %s0, %s230
      %p232 = pneg %p51
      %p233 = pneg %p48
      %p234 = scmp.lt.s32.totalorder %s20, 1
      %s235 = scalar_select %p234, %s20, 1
      %p236 = scmp.lt.s32.totalorder %s21, 0
      %s237 = scalar_select %p236, %s21, 0
      %s238 = sadd.s32 %s237, %s235
      %s239 = smul.addr %s238, 4
      %s240 = scalar_lea.vmem %s1, %s239
      %p241 = pneg %p79
      %p242 = pneg %p76
      %p243 = pneg %p100
      %p244 = pneg %p97
      %p245 = pneg %p121
      %p246 = pneg %p118
      %p247 = pneg %p142
      %p248 = pneg %p139
      %p249 = pneg %p170
      %p250 = pneg %p167
      %p251 = scmp.lt.s32.totalorder %s20, 1
      %s252 = scalar_select %p251, %s20, 1
      %p253 = scmp.lt.s32.totalorder %s21, 0
      %s254 = scalar_select %p253, %s21, 0
      %s255 = smul.addr %s252, 8
      %s256 = sadd.s32 %s254, %s255
      %s257 = smul.addr %s256, 8
      %s258 = scalar_lea.vmem %s5, %s257
      %p259 = scmp.lt.s32.totalorder %s20, 1
      %s260 = scalar_select %p259, %s20, 1
      %p261 = scmp.lt.s32.totalorder %s21, 0
      %s262 = scalar_select %p261, %s21, 0
      %s263 = sadd.s32 %s262, %s260
      %s264 = smul.addr %s263, 4
      %s265 = scalar_lea.vmem %s0, %s264
      %p266 = scmp.lt.s32.totalorder %s20, 1
      %s267 = scalar_select %p266, %s20, 1
      %p268 = scmp.lt.s32.totalorder %s21, 0
      %s269 = scalar_select %p268, %s21, 0
      %s270 = sadd.s32 %s269, %s267
      %s271 = smul.addr %s270, 4
      %s272 = scalar_lea.vmem %s1, %s271
      %p273 = scmp.lt.s32.totalorder %s20, 1
      %s274 = scalar_select %p273, %s20, 1
      %p275 = scmp.lt.s32.totalorder %s21, 0
      %s276 = scalar_select %p275, %s21, 0
      %s277 = smul.addr %s274, 8
      %s278 = sadd.s32 %s276, %s277
      %s279 = smul.addr %s278, 8
      %s280 = scalar_lea.vmem %s5, %s279
      %v281 = vld [vmem:[%s2] sm:$0xff]
      %v282 = vld [vmem:[%s2 + $0x8] sm:$0xff]
      %v283 = vld [vmem:[%s2 + $0x10] sm:$0xff]
      %v284 = vld [vmem:[%s2 + $0x18] sm:$0xff]
      %v285 = vld [vmem:[%s265] sm:$0xf]
      %v286 = vld [vmem:[%s3] sm:$0xff]
      %v287 = vld [vmem:[%s3 + $0x8] sm:$0xff]
      %v288 = vld [vmem:[%s3 + $0x10] sm:$0xff]
      %v289 = vld [vmem:[%s3 + $0x18] sm:$0xff]
      %v290 = vld [vmem:[%s272] sm:$0x7]
      %v291 = vld [vmem:[%s4] sm:$0xff]
      %v292 = vld [vmem:[%s4 + $0x8] sm:$0xff]
      %v293 = vld [vmem:[%s4 + $0x10] sm:$0xff]
      %v294 = vld [vmem:[%s4 + $0x18] sm:$0xff]
      %296 = vset.pattern.permute.xlu0 0
      %297 = vperm.xlu0 %296, %v291
      %v298 = vpop.permute.xlu0 %297
      %301 = vset.pattern.permute.xlu0 0
      %302 = vperm.xlu0 %301, %v292
      %v303 = vpop.permute.xlu0 %302
      %306 = vset.pattern.permute.xlu0 0
      %307 = vperm.xlu0 %306, %v293
      %v308 = vpop.permute.xlu0 %307
      %311 = vset.pattern.permute.xlu0 0
      %312 = vperm.xlu0 %311, %v294
      %v313 = vpop.permute.xlu0 %312
      %vm315 = vcmask 31744
      %v317 = vsel %vm315, %v281, 0
      %v320 = vsel %vm315, %v282, 0
      %v323 = vsel %vm315, %v283, 0
      %v326 = vsel %vm315, %v284, 0
      %vm328 = vcmask 1043456
      %v330 = vsel %vm328, %v285, 0
      %332 = vmatprep.subr.mxu0 0.0
      %333 = vmatpush1.msra.mxu0 %v330
      %334 = vmatprep.subr.mxu0 0.0
      %335 = vmatpush1.msra.mxu0 0.0
      %336 = vmatprep.subr.mxu0 0.0
      %337 = vmatpush1.msra.mxu0 0.0
      %338 = vmatprep.subr.mxu0 0.0
      %339 = vmatpush1.msra.mxu0 0.0
      %340 = vmatprep.subr.mxu0 0.0
      %341 = vmatpush1.msra.mxu0 0.0
      %342 = vmatprep.subr.mxu0 0.0
      %343 = vmatpush1.msra.mxu0 0.0
      %344 = vmatprep.subr.mxu0 0.0
      %345 = vmatpush1.msra.mxu0 0.0
      %346 = vmatprep.subr.mxu0 0.0
      %347 = vmatpush1.msra.mxu0 0.0
      %348 = vmatprep.subr.mxu0 0.0
      %349 = vmatpush1.msra.mxu0 0.0
      %350 = vmatprep.subr.mxu0 0.0
      %351 = vmatpush1.msra.mxu0 0.0
      %352 = vmatprep.subr.mxu0 0.0
      %353 = vmatpush1.msra.mxu0 0.0
      %354 = vmatprep.subr.mxu0 0.0
      %355 = vmatpush1.msra.mxu0 0.0
      %356 = vmatprep.subr.mxu0 0.0
      %357 = vmatpush1.msra.mxu0 0.0
      %358 = vmatprep.subr.mxu0 0.0
      %359 = vmatpush1.msra.mxu0 0.0
      %360 = vmatprep.subr.mxu0 0.0
      %361 = vmatpush1.msra.mxu0 0.0
      %362 = vmatprep.subr.mxu0 0.0
      %363 = vmatpush1.msra.mxu0 0.0
      %364 = vmatprep.subr.mxu0 0.0
      %365 = vmatpush1.msra.mxu0 0.0
      %366 = vmatprep.subr.mxu0 0.0
      %367 = vmatpush1.msra.mxu0 0.0
      %368 = vmatprep.subr.mxu0 0.0
      %369 = vmatpush1.msra.mxu0 0.0
      %370 = vmatprep.subr.mxu0 0.0
      %371 = vmatpush1.msra.mxu0 0.0
      %372 = vmatprep.subr.mxu0 0.0
      %373 = vmatpush1.msra.mxu0 0.0
      %374 = vmatprep.subr.mxu0 0.0
      %375 = vmatpush1.msra.mxu0 0.0
      %376 = vmatprep.subr.mxu0 0.0
      %377 = vmatpush1.msra.mxu0 0.0
      %378 = vmatprep.subr.mxu0 0.0
      %379 = vmatpush1.msra.mxu0 0.0
      %380 = vmatprep.subr.mxu0 0.0
      %381 = vmatpush1.msra.mxu0 0.0
      %382 = vmatprep.subr.mxu0 0.0
      %383 = vmatpush1.msra.mxu0 0.0
      %384 = vmatprep.subr.mxu0 0.0
      %385 = vmatpush1.msra.mxu0 0.0
      %386 = vmatprep.subr.mxu0 0.0
      %387 = vmatpush1.msra.mxu0 0.0
      %388 = vmatprep.subr.mxu0 0.0
      %389 = vmatpush1.msra.mxu0 0.0
      %390 = vmatprep.subr.mxu0 0.0
      %391 = vmatpush1.msra.mxu0 0.0
      %392 = vmatprep.subr.mxu0 0.0
      %393 = vmatpush1.msra.mxu0 0.0
      %394 = vmatprep.subr.mxu0 0.0
      %395 = vmatpush1.msra.mxu0 0.0
      %396 = vmatprep.mubr.f32.mxu0 0.0
      %397 = vmatmul.mubr.f32.gmra.mrb[0].mxu0 %v317
      %v398 = vpop.f32.mrb[0].mxu0
      %v399 = vadd.f32 %v298, %v398
      %v400 = vpop.f32.mrb[0].mxu0
      %401 = vmatprep.mubr.f32.mxu0 0.0
      %402 = vmatmul.mubr.f32.gmra.mrb[0].mxu0 %v320
      %v403 = vpop.f32.mrb[0].mxu0
      %v404 = vadd.f32 %v303, %v403
      %v405 = vpop.f32.mrb[0].mxu0
      %406 = vmatprep.mubr.f32.mxu0 0.0
      %407 = vmatmul.mubr.f32.gmra.mrb[0].mxu0 %v323
      %v408 = vpop.f32.mrb[0].mxu0
      %v409 = vadd.f32 %v308, %v408
      %v410 = vpop.f32.mrb[0].mxu0
      %411 = vmatprep.mubr.f32.mxu0 0.0
      %412 = vmatmul.mubr.f32.gmra.mrb[0].mxu0 %v326
      %v413 = vpop.f32.mrb[0].mxu0
      %v414 = vadd.f32 %v313, %v413
      %v415 = vpop.f32.mrb[0].mxu0
      %416 = vdwg.mxu0
      %vm417 = vcmask 785408
      %418 = vst.msk [vmem:[%s280] sm:$0xff] %vm417, %v399
      %419 = vst.msk [vmem:[%s280 + $0x8] sm:$0xff] %vm417, %v404
      %420 = vst.msk [vmem:[%s280 + $0x10] sm:$0xff] %vm417, %v409
      %421 = vst.msk [vmem:[%s280 + $0x18] sm:$0xff] %vm417, %v414
      %v422 = vld [vmem:[%s4 + $0x20] sm:$0xff]
      %v423 = vld [vmem:[%s4 + $0x28] sm:$0xff]
      %v424 = vld [vmem:[%s4 + $0x30] sm:$0xff]
      %v425 = vld [vmem:[%s4 + $0x38] sm:$0xff]
      %427 = vset.pattern.permute.xlu0 0
      %428 = vperm.xlu0 %427, %v422
      %v429 = vpop.permute.xlu0 %428
      %432 = vset.pattern.permute.xlu0 0
      %433 = vperm.xlu0 %432, %v423
      %v434 = vpop.permute.xlu0 %433
      %437 = vset.pattern.permute.xlu0 0
      %438 = vperm.xlu0 %437, %v424
      %v439 = vpop.permute.xlu0 %438
      %442 = vset.pattern.permute.xlu0 0
      %443 = vperm.xlu0 %442, %v425
      %v444 = vpop.permute.xlu0 %443
      %vm446 = vcmask 23552
      %v448 = vsel %vm446, %v286, 0
      %v451 = vsel %vm446, %v287, 0
      %v454 = vsel %vm446, %v288, 0
      %v457 = vsel %vm446, %v289, 0
      %vm459 = vcmask 1042432
      %v461 = vsel %vm459, %v290, 0
      %463 = vmatprep.subr.mxu0 0.0
      %464 = vmatpush1.msra.mxu0 %v461
      %465 = vmatprep.subr.mxu0 0.0
      %466 = vmatpush1.msra.mxu0 0.0
      %467 = vmatprep.subr.mxu0 0.0
      %468 = vmatpush1.msra.mxu0 0.0
      %469 = vmatprep.subr.mxu0 0.0
      %470 = vmatpush1.msra.mxu0 0.0
      %471 = vmatprep.subr.mxu0 0.0
      %472 = vmatpush1.msra.mxu0 0.0
      %473 = vmatprep.subr.mxu0 0.0
      %474 = vmatpush1.msra.mxu0 0.0
      %475 = vmatprep.subr.mxu0 0.0
      %476 = vmatpush1.msra.mxu0 0.0
      %477 = vmatprep.subr.mxu0 0.0
      %478 = vmatpush1.msra.mxu0 0.0
      %479 = vmatprep.subr.mxu0 0.0
      %480 = vmatpush1.msra.mxu0 0.0
      %481 = vmatprep.subr.mxu0 0.0
      %482 = vmatpush1.msra.mxu0 0.0
      %483 = vmatprep.subr.mxu0 0.0
      %484 = vmatpush1.msra.mxu0 0.0
      %485 = vmatprep.subr.mxu0 0.0
      %486 = vmatpush1.msra.mxu0 0.0
      %487 = vmatprep.subr.mxu0 0.0
      %488 = vmatpush1.msra.mxu0 0.0
      %489 = vmatprep.subr.mxu0 0.0
      %490 = vmatpush1.msra.mxu0 0.0
      %491 = vmatprep.subr.mxu0 0.0
      %492 = vmatpush1.msra.mxu0 0.0
      %493 = vmatprep.subr.mxu0 0.0
      %494 = vmatpush1.msra.mxu0 0.0
      %495 = vmatprep.subr.mxu0 0.0
      %496 = vmatpush1.msra.mxu0 0.0
      %497 = vmatprep.subr.mxu0 0.0
      %498 = vmatpush1.msra.mxu0 0.0
      %499 = vmatprep.subr.mxu0 0.0
      %500 = vmatpush1.msra.mxu0 0.0
      %501 = vmatprep.subr.mxu0 0.0
      %502 = vmatpush1.msra.mxu0 0.0
      %503 = vmatprep.subr.mxu0 0.0
      %504 = vmatpush1.msra.mxu0 0.0
      %505 = vmatprep.subr.mxu0 0.0
      %506 = vmatpush1.msra.mxu0 0.0
      %507 = vmatprep.subr.mxu0 0.0
      %508 = vmatpush1.msra.mxu0 0.0
      %509 = vmatprep.subr.mxu0 0.0
      %510 = vmatpush1.msra.mxu0 0.0
      %511 = vmatprep.subr.mxu0 0.0
      %512 = vmatpush1.msra.mxu0 0.0
      %513 = vmatprep.subr.mxu0 0.0
      %514 = vmatpush1.msra.mxu0 0.0
      %515 = vmatprep.subr.mxu0 0.0
      %516 = vmatpush1.msra.mxu0 0.0
      %517 = vmatprep.subr.mxu0 0.0
      %518 = vmatpush1.msra.mxu0 0.0
      %519 = vmatprep.subr.mxu0 0.0
      %520 = vmatpush1.msra.mxu0 0.0
      %521 = vmatprep.subr.mxu0 0.0
      %522 = vmatpush1.msra.mxu0 0.0
      %523 = vmatprep.subr.mxu0 0.0
      %524 = vmatpush1.msra.mxu0 0.0
      %525 = vmatprep.subr.mxu0 0.0
      %526 = vmatpush1.msra.mxu0 0.0
      %527 = vmatprep.mubr.f32.mxu0 0.0
      %528 = vmatmul.mubr.f32.gmra.mrb[0].mxu0 %v448
      %v529 = vpop.f32.mrb[0].mxu0
      %v530 = vadd.f32 %v429, %v529
      %v531 = vpop.f32.mrb[0].mxu0
      %532 = vmatprep.mubr.f32.mxu0 0.0
      %533 = vmatmul.mubr.f32.gmra.mrb[0].mxu0 %v451
      %v534 = vpop.f32.mrb[0].mxu0
      %v535 = vadd.f32 %v434, %v534
      %v536 = vpop.f32.mrb[0].mxu0
      %537 = vmatprep.mubr.f32.mxu0 0.0
      %538 = vmatmul.mubr.f32.gmra.mrb[0].mxu0 %v454
      %v539 = vpop.f32.mrb[0].mxu0
      %v540 = vadd.f32 %v439, %v539
      %v541 = vpop.f32.mrb[0].mxu0
      %542 = vmatprep.mubr.f32.mxu0 0.0
      %543 = vmatmul.mubr.f32.gmra.mrb[0].mxu0 %v457
      %v544 = vpop.f32.mrb[0].mxu0
      %v545 = vadd.f32 %v444, %v544
      %v546 = vpop.f32.mrb[0].mxu0
      %547 = vdwg.mxu0
      %548 = vst.msk [vmem:[%s280 + $0x20] sm:$0xff] %vm417, %v530
      %549 = vst.msk [vmem:[%s280 + $0x28] sm:$0xff] %vm417, %v535
      %550 = vst.msk [vmem:[%s280 + $0x30] sm:$0xff] %vm417, %v540
      %551 = vst.msk [vmem:[%s280 + $0x38] sm:$0xff] %vm417, %v545
      %p552 = scmp.lt.s32.totalorder %s20, 1
      %s553 = scalar_select %p552, %s20, 1
      %p554 = scmp.lt.s32.totalorder %s21, 0
      %s555 = scalar_select %p554, %s21, 0
      %s556 = smul.addr %s553, 8
      %s557 = sadd.s32 %s555, %s556
      %s558 = smul.addr %s557, 8
      %s559 = scalar_lea.vmem %s5, %s558
      // Predicated region
      $region41: #{embed_layer_pallas.1} parent=39 // pred_check
        %p560 = pneg %p167
      $region42: #{embed_layer_pallas.1} parent=39 // pred_check_branch
        %562 = sbr.rel (%p560) target = $region44
      $region43: #{embed_layer_pallas.1} parent=39 // pred_region
        _
      $region44: #{embed_layer_pallas.1} parent=39 // pred_fallthru
        _
    $region40: #{embed_layer_pallas.1} parent=5 // pred_fallthru
      _
    %p563 = scmp.le.s32.totalorder 2, %s11
    // Predicated region
    $region45: #{embed_layer_pallas.1} parent=5 // pred_check
      %p564 = pneg %p563
    $region46: #{embed_layer_pallas.1} parent=5 // pred_check_branch
      %566 = sbr.rel (%p564) target = $region48
    $region47: #{embed_layer_pallas.1} parent=5 // pred_region
      %s567 = ssub.s32 %s11, 2
      // Predicated region
      $region49: #{embed_layer_pallas.1} parent=47 // pred_check
        %p568 = pneg %p173
      $region50: #{embed_layer_pallas.1} parent=47 // pred_check_branch
        %570 = sbr.rel (%p568) target = $region52
      $region51: #{embed_layer_pallas.1} parent=47 // pred_region
        %p571 = scmp.lt.s32.totalorder %s22, 1
        %s572 = scalar_select %p571, %s22, 1
        %p573 = scmp.lt.s32.totalorder %s23, 0
        %s574 = scalar_select %p573, %s23, 0
        %s575 = smul.addr %s572, 8
        %s576 = sadd.s32 %s574, %s575
        %s577 = smul.addr %s576, 8
        %s578 = scalar_lea.vmem %s5, %s577
      $region52: #{embed_layer_pallas.1} parent=47 // pred_fallthru
        _
    $region48: #{embed_layer_pallas.1} parent=5 // pred_fallthru
      _
  $region6: #{embed_layer_pallas.1} parent=0 // loop_footer
    %s15 = sadd.s32 1, %s11
  $region7: #{embed_layer_pallas.1} parent=0 // loop_footer_branch
    %10 = sbr.rel target = $region3
  $region8: #{embed_layer_pallas.1} parent=0 // loop_exit
    _

</llo_original>
